<compile_context>
chip_gen: v7x
topology: tpu7x:2x2x1
jax: 0.10.0
libtpu: 0.0.40
codegen_flags: <defaults>
</compile_context>

<pallas_src>
import jax
import jax.numpy as jnp
import numpy as np
from jax.experimental import pallas as pl
from jax.experimental.pallas import tpu as pltpu

IN_FEATURES = 28 * 28      # 784
HIDDEN = 128
OUT_FEATURES = 10
OUT_PAD = 128              # lane-dense padded fc2 output width (unmasked vst)


def mlp_kernel(x_ref, w1_ref, b1_ref, w2_ref, b2_ref, o_ref):
    # fc1: (tile_n, 784) @ (784, 128), f32 accumulation on the MXU.
    h = jnp.dot(x_ref[...], w1_ref[...], preferred_element_type=jnp.float32)
    # bias + ReLU in f32 (VPU; free under the DMA/MXU-bound bundles).
    h = jnp.maximum(h + b1_ref[...], 0.0)
    # fc2: (tile_n, 128) @ (128, 128-padded), f32 accumulation.
    out = jnp.dot(h.astype(w2_ref.dtype), w2_ref[...],
                  preferred_element_type=jnp.float32)
    o_ref[...] = (out + b2_ref[...]).astype(o_ref.dtype)


def _pick_tile_n(n, tile_n_default):
    """Choose a batch tile that satisfies the (8,128) sublane rule and gives
    at least 2 grid steps when possible (v7x megacore)."""
    if n <= 8:
        return n                       # block == full batch dim (allowed)
    if n <= tile_n_default:
        # Split small batches into exactly 2 grid steps, sublane-multiple-of-8.
        half = -(-n // 2)              # ceil(n / 2)
        return 8 * (-(-half // 8))     # round up to multiple of 8
    return tile_n_default              # multiple of 8 by construction (1024)


def simple_nn_forward(x, w1, b1, w2, b2, *, tile_n=1024, return_lane_padded=False):
    """Forward pass of SimpleNN.

    x : any shape with 784 trailing elements per sample (e.g. (N,1,28,28)).
        f32 or bf16; the kernel computes/stores in x's dtype (f32 accumulate).
    w1: (784, 128), b1: (128,), w2: (128, 10), b2: (10,)   (weights stored as
        (in, out), i.e. already transposed relative to PyTorch's Linear).
    Returns (N, 10), or (N, 128) lane-padded if return_lane_padded=True.
    """
    x2d = x.reshape(-1, IN_FEATURES)
    n = x2d.shape[0]

    # Compute dtype follows the input's dtype: no wrapper-side cast pass over x.
    xdt = np.dtype(x2d.dtype)
    compute_dtype = x2d.dtype if xdt in (np.dtype(jnp.bfloat16),
                                         np.dtype(jnp.float32)) else jnp.float32
    if np.dtype(x2d.dtype) != np.dtype(compute_dtype):
        x2d = x2d.astype(compute_dtype)
    out_dtype = compute_dtype          # bf16 in -> bf16 out, f32 in -> f32 out

    # Weights / biases are tiny; casting/padding them is negligible.
    w1c = w1.astype(compute_dtype)                                   # (784, 128)
    w2p = jnp.zeros((HIDDEN, OUT_PAD), compute_dtype).at[:, :OUT_FEATURES].set(
        w2.astype(compute_dtype))                                    # (128, 128)
    b1_2d = b1.reshape(1, HIDDEN).astype(jnp.float32)                # (1, 128)
    b2p = jnp.zeros((1, OUT_PAD), jnp.float32).at[:, :OUT_FEATURES].set(
        b2.reshape(1, OUT_FEATURES).astype(jnp.float32))             # (1, 128)

    tile_n = _pick_tile_n(n, tile_n)
    num_tiles = pl.cdiv(n, tile_n)     # partial last block handled by Pallas

    itemsize = np.dtype(compute_dtype).itemsize
    out_itemsize = np.dtype(out_dtype).itemsize
    weight_bytes = ((IN_FEATURES * HIDDEN + HIDDEN * OUT_PAD) * itemsize
                    + (HIDDEN + OUT_PAD) * 4)

    cost = pl.CostEstimate(
        flops=2 * n * (IN_FEATURES * HIDDEN + HIDDEN * OUT_PAD),
        bytes_accessed=(n * IN_FEATURES * itemsize
                        + weight_bytes
                        + n * OUT_PAD * out_itemsize),
        transcendentals=0,
    )

    # Scoped-VMEM budget from the actual footprint (double-buffered x / out /
    # weights) + headroom; capped to v7x's 64 MiB physical VMEM.
    vmem_limit = int(1.25 * (2 * tile_n * IN_FEATURES * itemsize
                             + 2 * tile_n * OUT_PAD * out_itemsize
                             + 2 * weight_bytes)) + (2 << 20)
    vmem_limit = min(max(vmem_limit, 16 * 1024 * 1024), 64 * 1024 * 1024)

    out_padded = pl.pallas_call(
        mlp_kernel,
        out_shape=jax.ShapeDtypeStruct((n, OUT_PAD), out_dtype),
        grid_spec=pltpu.PrefetchScalarGridSpec(
            num_scalar_prefetch=0,
            grid=(num_tiles,),
            in_specs=[
                # streamed batch tile (double-buffered by the pipeline)
                pl.BlockSpec((tile_n, IN_FEATURES), lambda i: (i, 0)),
                # weights / biases: constant index_map -> VMEM-resident
                pl.BlockSpec((IN_FEATURES, HIDDEN), lambda i: (0, 0)),
                pl.BlockSpec((1, HIDDEN), lambda i: (0, 0)),
                pl.BlockSpec((HIDDEN, OUT_PAD), lambda i: (0, 0)),
                pl.BlockSpec((1, OUT_PAD), lambda i: (0, 0)),
            ],
            out_specs=pl.BlockSpec((tile_n, OUT_PAD), lambda i: (i, 0)),
        ),
        compiler_params=pltpu.CompilerParams(
            dimension_semantics=("parallel",),
            vmem_limit_bytes=vmem_limit,
        ),
        cost_estimate=cost,
    )(x2d, w1c, b1_2d, w2p, b2p)

    if return_lane_padded:
        return out_padded              # (N, 128); consumer reads first 10 lanes
    return out_padded[:, :OUT_FEATURES]


def init_params(key):
    """Deterministic init mirroring nn.Linear shapes (weights stored transposed)."""
    k1, k2, k3, k4 = jax.random.split(key, 4)
    # PyTorch nn.Linear default init: U(-1/sqrt(fan_in), 1/sqrt(fan_in))
    lim1 = 1.0 / jnp.sqrt(784.0)
    lim2 = 1.0 / jnp.sqrt(128.0)
    w1 = jax.random.uniform(k1, (IN_FEATURES, HIDDEN), jnp.float32, -lim1, lim1)
    b1 = jax.random.uniform(k2, (HIDDEN,), jnp.float32, -lim1, lim1)
    w2 = jax.random.uniform(k3, (HIDDEN, OUT_FEATURES), jnp.float32, -lim2, lim2)
    b2 = jax.random.uniform(k4, (OUT_FEATURES,), jnp.float32, -lim2, lim2)
    return w1, b1, w2, b2


if __name__ == "__main__":
    key = jax.random.PRNGKey(0)
    kx, kx2, kp = jax.random.split(key, 3)

    w1, b1, w2, b2 = init_params(kp)

    # Small MNIST-like batch: (batch=2, channels=1, 28, 28) -> single (2,784) tile.
    x = jax.random.normal(kx, (2, 1, 28, 28), jnp.float32)
    out = jax.block_until_ready(simple_nn_forward(x, w1, b1, w2, b2))
    xf = x.reshape(-1, IN_FEATURES)
    ref = jnp.maximum(xf @ w1 + b1, 0.0) @ w2 + b2
    assert out.shape == (2, OUT_FEATURES)
    assert jnp.allclose(out, ref, atol=1e-4, rtol=1e-4)

    # Partial-last-block path: n=11 with tile_n=8 -> grid=2, last block masked.
    x2 = jax.random.normal(kx2, (11, 1, 28, 28), jnp.float32)
    out2 = jax.block_until_ready(simple_nn_forward(x2, w1, b1, w2, b2, tile_n=8))
    ref2 = jnp.maximum(x2.reshape(-1, IN_FEATURES) @ w1 + b1, 0.0) @ w2 + b2
    assert out2.shape == (11, OUT_FEATURES)
    assert jnp.allclose(out2, ref2, atol=1e-4, rtol=1e-4)

    print("KERNEL_OK")
</pallas_src>

<mosaic_0001>
module attributes {stable_mosaic.version = 11 : i64} {
  func.func @mlp_kernel(%arg0: i32, %arg1: memref<2x784xf32, #tpu.memory_space<vmem>>, %arg2: memref<784x128xf32, #tpu.memory_space<vmem>>, %arg3: memref<1x128xf32, #tpu.memory_space<vmem>>, %arg4: memref<128x128xf32, #tpu.memory_space<vmem>>, %arg5: memref<1x128xf32, #tpu.memory_space<vmem>>, %arg6: memref<2x128xf32, #tpu.memory_space<vmem>>) attributes {dimension_semantics = [#tpu.dimension_semantics<parallel>], iteration_bounds = array<i64: 1>, scalar_prefetch = 0 : i64, scratch_operands = 0 : i64, tpu.core_type = #tpu.core_type<tc>, window_params = [{transform_indices = @transform_0, window_bounds = array<i64: 2, 784>}, {pipeline_mode = #tpu.pipeline_mode<synchronous>, transform_indices = @transform_1, window_bounds = array<i64: 784, 128>}, {pipeline_mode = #tpu.pipeline_mode<synchronous>, transform_indices = @transform_2, window_bounds = array<i64: 1, 128>}, {pipeline_mode = #tpu.pipeline_mode<synchronous>, transform_indices = @transform_3, window_bounds = array<i64: 128, 128>}, {pipeline_mode = #tpu.pipeline_mode<synchronous>, transform_indices = @transform_4, window_bounds = array<i64: 1, 128>}, {transform_indices = @transform_5, window_bounds = array<i64: 2, 128>}]} {
    %c0 = arith.constant 0 : index
    %c0_0 = arith.constant 0 : index
    %0 = vector.load %arg1[%c0, %c0_0] : memref<2x784xf32, #tpu.memory_space<vmem>>, vector<2x784xf32>
    %c0_1 = arith.constant 0 : index
    %c0_2 = arith.constant 0 : index
    %1 = vector.load %arg2[%c0_1, %c0_2] : memref<784x128xf32, #tpu.memory_space<vmem>>, vector<784x128xf32>
    %cst = arith.constant dense<0.000000e+00> : vector<2x128xf32>
    %2 = tpu.matmul %0, %1, %cst {dimension_numbers = #tpu.dot_dimension_numbers<[1], [0], [0], [1], [0, 0, 1, 1], [], []>} : vector<2x784xf32>, vector<784x128xf32>, vector<2x128xf32> -> vector<2x128xf32>
    %c0_3 = arith.constant 0 : index
    %c0_4 = arith.constant 0 : index
    %3 = vector.load %arg3[%c0_3, %c0_4] : memref<1x128xf32, #tpu.memory_space<vmem>>, vector<1x128xf32>
    %4 = vector.broadcast %3 : vector<1x128xf32> to vector<2x128xf32>
    %5 = arith.addf %2, %4 : vector<2x128xf32>
    %cst_5 = arith.constant 0.000000e+00 : f32
    %6 = vector.broadcast %cst_5 : f32 to vector<2x128xf32>
    %7 = arith.maximumf %5, %6 : vector<2x128xf32>
    %c0_6 = arith.constant 0 : index
    %c0_7 = arith.constant 0 : index
    %8 = vector.load %arg4[%c0_6, %c0_7] : memref<128x128xf32, #tpu.memory_space<vmem>>, vector<128x128xf32>
    %cst_8 = arith.constant dense<0.000000e+00> : vector<2x128xf32>
    %9 = tpu.matmul %7, %8, %cst_8 {dimension_numbers = #tpu.dot_dimension_numbers<[1], [0], [0], [1], [0, 0, 1, 1], [], []>} : vector<2x128xf32>, vector<128x128xf32>, vector<2x128xf32> -> vector<2x128xf32>
    %c0_9 = arith.constant 0 : index
    %c0_10 = arith.constant 0 : index
    %10 = vector.load %arg5[%c0_9, %c0_10] : memref<1x128xf32, #tpu.memory_space<vmem>>, vector<1x128xf32>
    %11 = vector.broadcast %10 : vector<1x128xf32> to vector<2x128xf32>
    %12 = arith.addf %9, %11 : vector<2x128xf32>
    %c0_11 = arith.constant 0 : index
    %c0_12 = arith.constant 0 : index
    %13 = vector.load %arg6[%c0_11, %c0_12] : memref<2x128xf32, #tpu.memory_space<vmem>>, vector<2x128xf32>
    tpu.vector_store %arg6[%c0_11, %c0_12], %12 {strides = array<i32>} : memref<2x128xf32, #tpu.memory_space<vmem>>, vector<2x128xf32>,
    return
  }
  func.func @transform_0(%arg0: i32) -> (i32, i32) {
    %c0_i32 = arith.constant 0 : i32
    %c0_i32_0 = arith.constant 0 : i32
    return %arg0, %c0_i32 : i32, i32
  }
  func.func @transform_1(%arg0: i32) -> (i32, i32) {
    %c0_i32 = arith.constant 0 : i32
    %c0_i32_0 = arith.constant 0 : i32
    %c0_i32_1 = arith.constant 0 : i32
    return %c0_i32, %c0_i32_0 : i32, i32
  }
  func.func @transform_2(%arg0: i32) -> (i32, i32) {
    %c0_i32 = arith.constant 0 : i32
    %c0_i32_0 = arith.constant 0 : i32
    %c0_i32_1 = arith.constant 0 : i32
    return %c0_i32, %c0_i32_0 : i32, i32
  }
  func.func @transform_3(%arg0: i32) -> (i32, i32) {
    %c0_i32 = arith.constant 0 : i32
    %c0_i32_0 = arith.constant 0 : i32
    %c0_i32_1 = arith.constant 0 : i32
    return %c0_i32, %c0_i32_0 : i32, i32
  }
  func.func @transform_4(%arg0: i32) -> (i32, i32) {
    %c0_i32 = arith.constant 0 : i32
    %c0_i32_0 = arith.constant 0 : i32
    %c0_i32_1 = arith.constant 0 : i32
    return %c0_i32, %c0_i32_0 : i32, i32
  }
  func.func @transform_5(%arg0: i32) -> (i32, i32) {
    %c0_i32 = arith.constant 0 : i32
    %c0_i32_0 = arith.constant 0 : i32
    return %arg0, %c0_i32 : i32, i32
  }
}

</mosaic_0001>

<llo_original>
// kernel: tpu_custom_call.1
$region0: #{tpu_custom_call.1}
  #allocation0 [shape = 'u32[]', space=smem, size = 0x4, offset = 0x4, fixed_abs, tag = 'smem constant byte address 0x4 - core index']
  #allocation1 [shape = 'u32[144,128]{1,0:T(1,128)}', space=vmem, size = 0x12000, scoped, tag = 'internal scratch']
  %s0 = inlined_call_operand.hbm [shape: f32[2,784], index: 0, kind: input, shape index: {}]
  %s1 = inlined_call_operand.hbm [shape: f32[784,128], index: 1, kind: input, shape index: {}]
  %s2 = inlined_call_operand.vmem [shape: f32[1,128], index: 2, kind: input, shape index: {}]
  %s3 = inlined_call_operand.hbm [shape: f32[128,128], index: 3, kind: input, shape index: {}]
  %s4 = inlined_call_operand.vmem [shape: f32[1,128], index: 4, kind: input, shape index: {}]
  %s5 = inlined_call_operand.hbm [shape: f32[2,128], index: 5, kind: output, shape index: {}]
  %s6 = sld [smem:[#allocation0]]
  $region42: #{tpu_custom_call.1} parent=0
    _
  %s8 = ssub.s32 1, %s6
  %s9 = scalar_select 0, %s8, %s6
  $region1: #{tpu_custom_call.1} parent=0
    #allocation2 [shape = 'u8[7168]{0}', space=vmem, size = 0x1c00, scoped, tag = 'input window, operand 0, single buffered']
    #allocation3 [shape = 's32[1]{0}', space=sflag, size = 0x4, scoped, tag = 'scoped memory for tpu_custom_call.1']
    #allocation4 [shape = 's32[1]{0}', space=sflag, size = 0x4, scoped, tag = 'scoped memory for tpu_custom_call.1']
    #allocation5 [shape = 'u8[401408]{0}', space=vmem, size = 0x62000, scoped, tag = 'input window, operand 1, single buffered']
    #allocation6 [shape = 's32[1]{0}', space=sflag, size = 0x4, scoped, tag = 'scoped memory for tpu_custom_call.1']
    #allocation7 [shape = 'u8[65536]{0}', space=vmem, size = 0x10000, scoped, tag = 'input window, operand 3, single buffered']
    #allocation8 [shape = 'u8[1024]{0}', space=vmem, size = 0x400, scoped, tag = 'output window, operand 0, single buffered']
    %10 = vsyncpa [#allocation3], 0
    %11 = vsyncpa [#allocation6], 0
    %12 = vsyncpa [#allocation4], 0
    // Predicated region
    $region2: #{tpu_custom_call.1} parent=1 // pred_check
      _
    $region3: #{tpu_custom_call.1} parent=1 // pred_check_branch
      %14 = sbr.rel (0) target = $region5
    $region4: #{tpu_custom_call.1} parent=1 // pred_region
      %s16 = ssub.s32 224, 224
      %17 = vsyncadd [#allocation3], %s16
      %s19 = sshll.u32 [#allocation2], 4
      %s20 = int_to_ptr.vmem [resolvable:$true] %s19
      %22 = dma.hbm_to_vmem [thread:$0]  %s0, 224, %s20, [#allocation3]
    $region5: #{tpu_custom_call.1} parent=1 // pred_fallthru
      _
    // Predicated region
    $region6: #{tpu_custom_call.1} parent=1 // pred_check
      _
    $region7: #{tpu_custom_call.1} parent=1 // pred_check_branch
      %24 = sbr.rel (0) target = $region9
    $region8: #{tpu_custom_call.1} parent=1 // pred_region
      %s26 = ssub.s32 12544, 12544
      %27 = vsyncadd [#allocation6], %s26
      %s28 = sshll.u32 [#allocation5], 4
      %s29 = int_to_ptr.vmem [resolvable:$true] %s28
      %34 = dma.hbm_to_vmem [thread:$0]  %s1, 12544, %s29, [#allocation6], 128, 128, 8
    $region9: #{tpu_custom_call.1} parent=1 // pred_fallthru
      _
    // Predicated region
    $region10: #{tpu_custom_call.1} parent=1 // pred_check
      _
    $region11: #{tpu_custom_call.1} parent=1 // pred_check_branch
      %36 = sbr.rel (0) target = $region13
    $region12: #{tpu_custom_call.1} parent=1 // pred_region
      _
    $region13: #{tpu_custom_call.1} parent=1 // pred_fallthru
      _
    // Predicated region
    $region14: #{tpu_custom_call.1} parent=1 // pred_check
      _
    $region15: #{tpu_custom_call.1} parent=1 // pred_check_branch
      %38 = sbr.rel (0) target = $region17
    $region16: #{tpu_custom_call.1} parent=1 // pred_region
      %s40 = ssub.s32 2048, 2048
      %41 = vsyncadd [#allocation6], %s40
      %s42 = sshll.u32 [#allocation7], 4
      %s43 = int_to_ptr.vmem [resolvable:$true] %s42
      %48 = dma.hbm_to_vmem [thread:$0]  %s3, 2048, %s43, [#allocation6], 128, 128, 8
    $region17: #{tpu_custom_call.1} parent=1 // pred_fallthru
      _
    // Predicated region
    $region18: #{tpu_custom_call.1} parent=1 // pred_check
      _
    $region19: #{tpu_custom_call.1} parent=1 // pred_check_branch
      %50 = sbr.rel (0) target = $region21
    $region20: #{tpu_custom_call.1} parent=1 // pred_region
      _
    $region21: #{tpu_custom_call.1} parent=1 // pred_fallthru
      _
    // Predicated region
    $region22: #{tpu_custom_call.1} parent=1 // pred_check
      _
    $region23: #{tpu_custom_call.1} parent=1 // pred_check_branch
      %52 = sbr.rel (0) target = $region25
    $region24: #{tpu_custom_call.1} parent=1 // pred_region
      %53 = dma.done [#allocation3], 224
    $region25: #{tpu_custom_call.1} parent=1 // pred_fallthru
      _
    // Predicated region
    $region26: #{tpu_custom_call.1} parent=1 // pred_check
      _
    $region27: #{tpu_custom_call.1} parent=1 // pred_check_branch
      %55 = sbr.rel (0) target = $region29
    $region28: #{tpu_custom_call.1} parent=1 // pred_region
      %56 = dma.done [#allocation6], 12544
    $region29: #{tpu_custom_call.1} parent=1 // pred_fallthru
      _
    // Predicated region
    $region30: #{tpu_custom_call.1} parent=1 // pred_check
      _
    $region31: #{tpu_custom_call.1} parent=1 // pred_check_branch
      %58 = sbr.rel (0) target = $region33
    $region32: #{tpu_custom_call.1} parent=1 // pred_region
      %59 = dma.done [#allocation6], 2048
    $region33: #{tpu_custom_call.1} parent=1 // pred_fallthru
      _
    %v60 = vld [vmem:[#allocation2] sm:$0xff]
    %v61 = vld [vmem:[#allocation2 + $0x8] sm:$0x3f]
    %v62 = vld [vmem:[#allocation5] sm:$0xff]
    %v63 = vld [vmem:[#allocation5 + $0x8] sm:$0xff]
    %v64 = vld [vmem:[#allocation5 + $0x10] sm:$0xff]
    %v65 = vld [vmem:[#allocation5 + $0x18] sm:$0xff]
    %v66 = vld [vmem:[#allocation5 + $0x20] sm:$0xff]
    %v67 = vld [vmem:[#allocation5 + $0x28] sm:$0xff]
    %v68 = vld [vmem:[#allocation5 + $0x30] sm:$0xff]
    %v69 = vld [vmem:[#allocation5 + $0x38] sm:$0xff]
    %v70 = vld [vmem:[#allocation5 + $0x40] sm:$0xff]
    %v71 = vld [vmem:[#allocation5 + $0x48] sm:$0xff]
    %v72 = vld [vmem:[#allocation5 + $0x50] sm:$0xff]
    %v73 = vld [vmem:[#allocation5 + $0x58] sm:$0xff]
    %v74 = vld [vmem:[#allocation5 + $0x60] sm:$0xff]
    %v75 = vld [vmem:[#allocation5 + $0x68] sm:$0xff]
    %v76 = vld [vmem:[#allocation5 + $0x70] sm:$0xff]
    %v77 = vld [vmem:[#allocation5 + $0x78] sm:$0xff]
    %v78 = vld [vmem:[#allocation5 + $0x80] sm:$0xff]
    %v79 = vld [vmem:[#allocation5 + $0x88] sm:$0xff]
    %v80 = vld [vmem:[#allocation5 + $0x90] sm:$0xff]
    %v81 = vld [vmem:[#allocation5 + $0x98] sm:$0xff]
    %v82 = vld [vmem:[#allocation5 + $0xa0] sm:$0xff]
    %v83 = vld [vmem:[#allocation5 + $0xa8] sm:$0xff]
    %v84 = vld [vmem:[#allocation5 + $0xb0] sm:$0xff]
    %v85 = vld [vmem:[#allocation5 + $0xb8] sm:$0xff]
    %v86 = vld [vmem:[#allocation5 + $0xc0] sm:$0xff]
    %v87 = vld [vmem:[#allocation5 + $0xc8] sm:$0xff]
    %v88 = vld [vmem:[#allocation5 + $0xd0] sm:$0xff]
    %v89 = vld [vmem:[#allocation5 + $0xd8] sm:$0xff]
    %v90 = vld [vmem:[#allocation5 + $0xe0] sm:$0xff]
    %v91 = vld [vmem:[#allocation5 + $0xe8] sm:$0xff]
    %v92 = vld [vmem:[#allocation5 + $0xf0] sm:$0xff]
    %v93 = vld [vmem:[#allocation5 + $0xf8] sm:$0xff]
    %v94 = vld [vmem:[#allocation5 + $0x100] sm:$0xff]
    %v95 = vld [vmem:[#allocation5 + $0x108] sm:$0xff]
    %v96 = vld [vmem:[#allocation5 + $0x110] sm:$0xff]
    %v97 = vld [vmem:[#allocation5 + $0x118] sm:$0xff]
    %v98 = vld [vmem:[#allocation5 + $0x120] sm:$0xff]
    %v99 = vld [vmem:[#allocation5 + $0x128] sm:$0xff]
    %v100 = vld [vmem:[#allocation5 + $0x130] sm:$0xff]
    %v101 = vld [vmem:[#allocation5 + $0x138] sm:$0xff]
    %v102 = vld [vmem:[#allocation5 + $0x140] sm:$0xff]
    %v103 = vld [vmem:[#allocation5 + $0x148] sm:$0xff]
    %v104 = vld [vmem:[#allocation5 + $0x150] sm:$0xff]
    %v105 = vld [vmem:[#allocation5 + $0x158] sm:$0xff]
    %v106 = vld [vmem:[#allocation5 + $0x160] sm:$0xff]
    %v107 = vld [vmem:[#allocation5 + $0x168] sm:$0xff]
    %v108 = vld [vmem:[#allocation5 + $0x170] sm:$0xff]
    %v109 = vld [vmem:[#allocation5 + $0x178] sm:$0xff]
    %v110 = vld [vmem:[#allocation5 + $0x180] sm:$0xff]
    %v111 = vld [vmem:[#allocation5 + $0x188] sm:$0xff]
    %v112 = vld [vmem:[#allocation5 + $0x190] sm:$0xff]
    %v113 = vld [vmem:[#allocation5 + $0x198] sm:$0xff]
    %v114 = vld [vmem:[#allocation5 + $0x1a0] sm:$0xff]
    %v115 = vld [vmem:[#allocation5 + $0x1a8] sm:$0xff]
    %v116 = vld [vmem:[#allocation5 + $0x1b0] sm:$0xff]
    %v117 = vld [vmem:[#allocation5 + $0x1b8] sm:$0xff]
    %v118 = vld [vmem:[#allocation5 + $0x1c0] sm:$0xff]
    %v119 = vld [vmem:[#allocation5 + $0x1c8] sm:$0xff]
    %v120 = vld [vmem:[#allocation5 + $0x1d0] sm:$0xff]
    %v121 = vld [vmem:[#allocation5 + $0x1d8] sm:$0xff]
    %v122 = vld [vmem:[#allocation5 + $0x1e0] sm:$0xff]
    %v123 = vld [vmem:[#allocation5 + $0x1e8] sm:$0xff]
    %v124 = vld [vmem:[#allocation5 + $0x1f0] sm:$0xff]
    %v125 = vld [vmem:[#allocation5 + $0x1f8] sm:$0xff]
    %v126 = vld [vmem:[#allocation5 + $0x200] sm:$0xff]
    %v127 = vld [vmem:[#allocation5 + $0x208] sm:$0xff]
    %v128 = vld [vmem:[#allocation5 + $0x210] sm:$0xff]
    %v129 = vld [vmem:[#allocation5 + $0x218] sm:$0xff]
    %v130 = vld [vmem:[#allocation5 + $0x220] sm:$0xff]
    %v131 = vld [vmem:[#allocation5 + $0x228] sm:$0xff]
    %v132 = vld [vmem:[#allocation5 + $0x230] sm:$0xff]
    %v133 = vld [vmem:[#allocation5 + $0x238] sm:$0xff]
    %v134 = vld [vmem:[#allocation5 + $0x240] sm:$0xff]
    %v135 = vld [vmem:[#allocation5 + $0x248] sm:$0xff]
    %v136 = vld [vmem:[#allocation5 + $0x250] sm:$0xff]
    %v137 = vld [vmem:[#allocation5 + $0x258] sm:$0xff]
    %v138 = vld [vmem:[#allocation5 + $0x260] sm:$0xff]
    %v139 = vld [vmem:[#allocation5 + $0x268] sm:$0xff]
    %v140 = vld [vmem:[#allocation5 + $0x270] sm:$0xff]
    %v141 = vld [vmem:[#allocation5 + $0x278] sm:$0xff]
    %v142 = vld [vmem:[#allocation5 + $0x280] sm:$0xff]
    %v143 = vld [vmem:[#allocation5 + $0x288] sm:$0xff]
    %v144 = vld [vmem:[#allocation5 + $0x290] sm:$0xff]
    %v145 = vld [vmem:[#allocation5 + $0x298] sm:$0xff]
    %v146 = vld [vmem:[#allocation5 + $0x2a0] sm:$0xff]
    %v147 = vld [vmem:[#allocation5 + $0x2a8] sm:$0xff]
    %v148 = vld [vmem:[#allocation5 + $0x2b0] sm:$0xff]
    %v149 = vld [vmem:[#allocation5 + $0x2b8] sm:$0xff]
    %v150 = vld [vmem:[#allocation5 + $0x2c0] sm:$0xff]
    %v151 = vld [vmem:[#allocation5 + $0x2c8] sm:$0xff]
    %v152 = vld [vmem:[#allocation5 + $0x2d0] sm:$0xff]
    %v153 = vld [vmem:[#allocation5 + $0x2d8] sm:$0xff]
    %v154 = vld [vmem:[#allocation5 + $0x2e0] sm:$0xff]
    %v155 = vld [vmem:[#allocation5 + $0x2e8] sm:$0xff]
    %v156 = vld [vmem:[#allocation5 + $0x2f0] sm:$0xff]
    %v157 = vld [vmem:[#allocation5 + $0x2f8] sm:$0xff]
    %v158 = vld [vmem:[#allocation5 + $0x300] sm:$0xff]
    %v159 = vld [vmem:[#allocation5 + $0x308] sm:$0xff]
    %v160 = vld [vmem:[%s2] sm:$0x1]
    %v162 = vlaneseq
    %v163 = vshrl.u32 %v162, 7
    %v164 = vsub.s32 0, %v163
    %v165 = vrot.slane %v160, %v164
    %v169 = vcombine.high %v60, %v60
    %v171 = vunpack.c.l.s4 1983009808
    %v172 = vunpack.c.0.s8 %v171
    %v173 = vlaneseq
    %v174 = vshrl.u32 %v173, 7
    %v175 = vsub.s32 %v172, %v174
    %v176 = vrot.slane %v60, %v175
    %v178 = vunpack.c.l.s4 1983009808
    %v179 = vunpack.c.0.s8 %v178
    %v180 = vlaneseq
    %v181 = vshrl.u32 %v180, 7
    %v182 = vsub.s32 %v179, %v181
    %v183 = vrot.slane %v169, %v182
    %v184 = vcombine.high %v176, %v176
    %v185 = vcombine.high %v183, %v183
    %v186 = vcombine.high %v61, %v61
    %v188 = vunpack.c.l.s4 1983009808
    %v189 = vunpack.c.0.s8 %v188
    %v190 = vlaneseq
    %v191 = vshrl.u32 %v190, 7
    %v192 = vsub.s32 %v189, %v191
    %v193 = vrot.slane %v61, %v192
    %v195 = vunpack.c.l.s4 1983009808
    %v196 = vunpack.c.0.s8 %v195
    %v197 = vlaneseq
    %v198 = vshrl.u32 %v197, 7
    %v199 = vsub.s32 %v196, %v198
    %v200 = vrot.slane %v186, %v199
    %v201 = vcombine.high %v193, %v193
    %vm208 = vcmask 130048
    %v209 = vsel %vm208, %v200, 0
    %211 = vmatprep.subr.mxu0 0.0
    %212 = vmatpush1.msra.mxu0 %v62
    %213 = vmatprep.subr.mxu0 0.0
    %214 = vmatpush1.msra.mxu0 %v63
    %215 = vmatprep.subr.mxu0 0.0
    %216 = vmatpush1.msra.mxu0 %v64
    %217 = vmatprep.subr.mxu0 0.0
    %218 = vmatpush1.msra.mxu0 %v65
    %219 = vmatprep.subr.mxu0 0.0
    %220 = vmatpush1.msra.mxu0 %v66
    %221 = vmatprep.subr.mxu0 0.0
    %222 = vmatpush1.msra.mxu0 %v67
    %223 = vmatprep.subr.mxu0 0.0
    %224 = vmatpush1.msra.mxu0 %v68
    %225 = vmatprep.subr.mxu0 0.0
    %226 = vmatpush1.msra.mxu0 %v69
    %227 = vmatprep.subr.mxu0 0.0
    %228 = vmatpush1.msra.mxu0 %v70
    %229 = vmatprep.subr.mxu0 0.0
    %230 = vmatpush1.msra.mxu0 %v71
    %231 = vmatprep.subr.mxu0 0.0
    %232 = vmatpush1.msra.mxu0 %v72
    %233 = vmatprep.subr.mxu0 0.0
    %234 = vmatpush1.msra.mxu0 %v73
    %235 = vmatprep.subr.mxu0 0.0
    %236 = vmatpush1.msra.mxu0 %v74
    %237 = vmatprep.subr.mxu0 0.0
    %238 = vmatpush1.msra.mxu0 %v75
    %239 = vmatprep.subr.mxu0 0.0
    %240 = vmatpush1.msra.mxu0 %v76
    %241 = vmatprep.subr.mxu0 0.0
    %242 = vmatpush1.msra.mxu0 %v77
    %243 = vmatprep.subr.mxu0 0.0
    %244 = vmatpush1.msra.mxu0 %v78
    %245 = vmatprep.subr.mxu0 0.0
    %246 = vmatpush1.msra.mxu0 %v79
    %247 = vmatprep.subr.mxu0 0.0
    %248 = vmatpush1.msra.mxu0 %v80
    %249 = vmatprep.subr.mxu0 0.0
    %250 = vmatpush1.msra.mxu0 %v81
    %251 = vmatprep.subr.mxu0 0.0
    %252 = vmatpush1.msra.mxu0 %v82
    %253 = vmatprep.subr.mxu0 0.0
    %254 = vmatpush1.msra.mxu0 %v83
    %255 = vmatprep.subr.mxu0 0.0
    %256 = vmatpush1.msra.mxu0 %v84
    %257 = vmatprep.subr.mxu0 0.0
    %258 = vmatpush1.msra.mxu0 %v85
    %259 = vmatprep.subr.mxu0 0.0
    %260 = vmatpush1.msra.mxu0 %v86
    %261 = vmatprep.subr.mxu0 0.0
    %262 = vmatpush1.msra.mxu0 %v87
    %263 = vmatprep.subr.mxu0 0.0
    %264 = vmatpush1.msra.mxu0 %v88
    %265 = vmatprep.subr.mxu0 0.0
    %266 = vmatpush1.msra.mxu0 %v89
    %267 = vmatprep.subr.mxu0 0.0
    %268 = vmatpush1.msra.mxu0 %v90
    %269 = vmatprep.subr.mxu0 0.0
    %270 = vmatpush1.msra.mxu0 %v91
    %271 = vmatprep.subr.mxu0 0.0
    %272 = vmatpush1.msra.mxu0 %v92
    %273 = vmatprep.subr.mxu0 0.0
    %274 = vmatpush1.msra.mxu0 %v93
    %275 = vmatprep.mubr.f32.mxu0 %v184
    %276 = vmatmul.mubr.f32.gmra.mrb[0].mxu0 %v176
    %v277 = vpop.f32.mrb[0].mxu0
    %v278 = vadd.f32 %v165, %v277
    %v279 = vpop.f32.mrb[0].mxu0
    %280 = vdwg.mxu0
    %281 = vmatprep.subr.mxu0 0.0
    %282 = vmatpush1.msra.mxu0 %v94
    %283 = vmatprep.subr.mxu0 0.0
    %284 = vmatpush1.msra.mxu0 %v95
    %285 = vmatprep.subr.mxu0 0.0
    %286 = vmatpush1.msra.mxu0 %v96
    %287 = vmatprep.subr.mxu0 0.0
    %288 = vmatpush1.msra.mxu0 %v97
    %289 = vmatprep.subr.mxu0 0.0
    %290 = vmatpush1.msra.mxu0 %v98
    %291 = vmatprep.subr.mxu0 0.0
    %292 = vmatpush1.msra.mxu0 %v99
    %293 = vmatprep.subr.mxu0 0.0
    %294 = vmatpush1.msra.mxu0 %v100
    %295 = vmatprep.subr.mxu0 0.0
    %296 = vmatpush1.msra.mxu0 %v101
    %297 = vmatprep.subr.mxu0 0.0
    %298 = vmatpush1.msra.mxu0 %v102
    %299 = vmatprep.subr.mxu0 0.0
    %300 = vmatpush1.msra.mxu0 %v103
    %301 = vmatprep.subr.mxu0 0.0
    %302 = vmatpush1.msra.mxu0 %v104
    %303 = vmatprep.subr.mxu0 0.0
    %304 = vmatpush1.msra.mxu0 %v105
    %305 = vmatprep.subr.mxu0 0.0
    %306 = vmatpush1.msra.mxu0 %v106
    %307 = vmatprep.subr.mxu0 0.0
    %308 = vmatpush1.msra.mxu0 %v107
    %309 = vmatprep.subr.mxu0 0.0
    %310 = vmatpush1.msra.mxu0 %v108
    %311 = vmatprep.subr.mxu0 0.0
    %312 = vmatpush1.msra.mxu0 %v109
    %313 = vmatprep.subr.mxu0 0.0
    %314 = vmatpush1.msra.mxu0 %v110
    %315 = vmatprep.subr.mxu0 0.0
    %316 = vmatpush1.msra.mxu0 %v111
    %317 = vmatprep.subr.mxu0 0.0
    %318 = vmatpush1.msra.mxu0 %v112
    %319 = vmatprep.subr.mxu0 0.0
    %320 = vmatpush1.msra.mxu0 %v113
    %321 = vmatprep.subr.mxu0 0.0
    %322 = vmatpush1.msra.mxu0 %v114
    %323 = vmatprep.subr.mxu0 0.0
    %324 = vmatpush1.msra.mxu0 %v115
    %325 = vmatprep.subr.mxu0 0.0
    %326 = vmatpush1.msra.mxu0 %v116
    %327 = vmatprep.subr.mxu0 0.0
    %328 = vmatpush1.msra.mxu0 %v117
    %329 = vmatprep.subr.mxu0 0.0
    %330 = vmatpush1.msra.mxu0 %v118
    %331 = vmatprep.subr.mxu0 0.0
    %332 = vmatpush1.msra.mxu0 %v119
    %333 = vmatprep.subr.mxu0 0.0
    %334 = vmatpush1.msra.mxu0 %v120
    %335 = vmatprep.subr.mxu0 0.0
    %336 = vmatpush1.msra.mxu0 %v121
    %337 = vmatprep.subr.mxu0 0.0
    %338 = vmatpush1.msra.mxu0 %v122
    %339 = vmatprep.subr.mxu0 0.0
    %340 = vmatpush1.msra.mxu0 %v123
    %341 = vmatprep.subr.mxu0 0.0
    %342 = vmatpush1.msra.mxu0 %v124
    %343 = vmatprep.subr.mxu0 0.0
    %344 = vmatpush1.msra.mxu0 %v125
    %345 = vmatprep.mubr.f32.mxu0 %v185
    %346 = vmatmul.mubr.f32.gmra.mrb[0].mxu0 %v183
    %v347 = vpop.f32.mrb[0].mxu0
    %v348 = vadd.f32 %v278, %v347
    %v349 = vpop.f32.mrb[0].mxu0
    %350 = vdwg.mxu0
    %351 = vmatprep.subr.mxu0 0.0
    %352 = vmatpush1.msra.mxu0 %v126
    %353 = vmatprep.subr.mxu0 0.0
    %354 = vmatpush1.msra.mxu0 %v127
    %355 = vmatprep.subr.mxu0 0.0
    %356 = vmatpush1.msra.mxu0 %v128
    %357 = vmatprep.subr.mxu0 0.0
    %358 = vmatpush1.msra.mxu0 %v129
    %359 = vmatprep.subr.mxu0 0.0
    %360 = vmatpush1.msra.mxu0 %v130
    %361 = vmatprep.subr.mxu0 0.0
    %362 = vmatpush1.msra.mxu0 %v131
    %363 = vmatprep.subr.mxu0 0.0
    %364 = vmatpush1.msra.mxu0 %v132
    %365 = vmatprep.subr.mxu0 0.0
    %366 = vmatpush1.msra.mxu0 %v133
    %367 = vmatprep.subr.mxu0 0.0
    %368 = vmatpush1.msra.mxu0 %v134
    %369 = vmatprep.subr.mxu0 0.0
    %370 = vmatpush1.msra.mxu0 %v135
    %371 = vmatprep.subr.mxu0 0.0
    %372 = vmatpush1.msra.mxu0 %v136
    %373 = vmatprep.subr.mxu0 0.0
    %374 = vmatpush1.msra.mxu0 %v137
    %375 = vmatprep.subr.mxu0 0.0
    %376 = vmatpush1.msra.mxu0 %v138
    %377 = vmatprep.subr.mxu0 0.0
    %378 = vmatpush1.msra.mxu0 %v139
    %379 = vmatprep.subr.mxu0 0.0
    %380 = vmatpush1.msra.mxu0 %v140
    %381 = vmatprep.subr.mxu0 0.0
    %382 = vmatpush1.msra.mxu0 %v141
    %383 = vmatprep.subr.mxu0 0.0
    %384 = vmatpush1.msra.mxu0 %v142
    %385 = vmatprep.subr.mxu0 0.0
    %386 = vmatpush1.msra.mxu0 %v143
    %387 = vmatprep.subr.mxu0 0.0
    %388 = vmatpush1.msra.mxu0 %v144
    %389 = vmatprep.subr.mxu0 0.0
    %390 = vmatpush1.msra.mxu0 %v145
    %391 = vmatprep.subr.mxu0 0.0
    %392 = vmatpush1.msra.mxu0 %v146
    %393 = vmatprep.subr.mxu0 0.0
    %394 = vmatpush1.msra.mxu0 %v147
    %395 = vmatprep.subr.mxu0 0.0
    %396 = vmatpush1.msra.mxu0 %v148
    %397 = vmatprep.subr.mxu0 0.0
    %398 = vmatpush1.msra.mxu0 %v149
    %399 = vmatprep.subr.mxu0 0.0
    %400 = vmatpush1.msra.mxu0 %v150
    %401 = vmatprep.subr.mxu0 0.0
    %402 = vmatpush1.msra.mxu0 %v151
    %403 = vmatprep.subr.mxu0 0.0
    %404 = vmatpush1.msra.mxu0 %v152
    %405 = vmatprep.subr.mxu0 0.0
    %406 = vmatpush1.msra.mxu0 %v153
    %407 = vmatprep.subr.mxu0 0.0
    %408 = vmatpush1.msra.mxu0 %v154
    %409 = vmatprep.subr.mxu0 0.0
    %410 = vmatpush1.msra.mxu0 %v155
    %411 = vmatprep.subr.mxu0 0.0
    %412 = vmatpush1.msra.mxu0 %v156
    %413 = vmatprep.subr.mxu0 0.0
    %414 = vmatpush1.msra.mxu0 %v157
    %415 = vmatprep.mubr.f32.mxu0 %v201
    %416 = vmatmul.mubr.f32.gmra.mrb[0].mxu0 %v193
    %v417 = vpop.f32.mrb[0].mxu0
    %v418 = vadd.f32 %v348, %v417
    %v419 = vpop.f32.mrb[0].mxu0
    %420 = vdwg.mxu0
    %421 = vmatprep.subr.mxu0 0.0
    %422 = vmatpush1.msra.mxu0 %v158
    %423 = vmatprep.subr.mxu0 0.0
    %424 = vmatpush1.msra.mxu0 %v159
    %425 = vmatprep.subr.mxu0 0.0
    %426 = vmatpush1.msra.mxu0 0.0
    %427 = vmatprep.subr.mxu0 0.0
    %428 = vmatpush1.msra.mxu0 0.0
    %429 = vmatprep.subr.mxu0 0.0
    %430 = vmatpush1.msra.mxu0 0.0
    %431 = vmatprep.subr.mxu0 0.0
    %432 = vmatpush1.msra.mxu0 0.0
    %433 = vmatprep.subr.mxu0 0.0
    %434 = vmatpush1.msra.mxu0 0.0
    %435 = vmatprep.subr.mxu0 0.0
    %436 = vmatpush1.msra.mxu0 0.0
    %437 = vmatprep.subr.mxu0 0.0
    %438 = vmatpush1.msra.mxu0 0.0
    %439 = vmatprep.subr.mxu0 0.0
    %440 = vmatpush1.msra.mxu0 0.0
    %441 = vmatprep.subr.mxu0 0.0
    %442 = vmatpush1.msra.mxu0 0.0
    %443 = vmatprep.subr.mxu0 0.0
    %444 = vmatpush1.msra.mxu0 0.0
    %445 = vmatprep.subr.mxu0 0.0
    %446 = vmatpush1.msra.mxu0 0.0
    %447 = vmatprep.subr.mxu0 0.0
    %448 = vmatpush1.msra.mxu0 0.0
    %449 = vmatprep.subr.mxu0 0.0
    %450 = vmatpush1.msra.mxu0 0.0
    %451 = vmatprep.subr.mxu0 0.0
    %452 = vmatpush1.msra.mxu0 0.0
    %453 = vmatprep.subr.mxu0 0.0
    %454 = vmatpush1.msra.mxu0 0.0
    %455 = vmatprep.subr.mxu0 0.0
    %456 = vmatpush1.msra.mxu0 0.0
    %457 = vmatprep.subr.mxu0 0.0
    %458 = vmatpush1.msra.mxu0 0.0
    %459 = vmatprep.subr.mxu0 0.0
    %460 = vmatpush1.msra.mxu0 0.0
    %461 = vmatprep.subr.mxu0 0.0
    %462 = vmatpush1.msra.mxu0 0.0
    %463 = vmatprep.subr.mxu0 0.0
    %464 = vmatpush1.msra.mxu0 0.0
    %465 = vmatprep.subr.mxu0 0.0
    %466 = vmatpush1.msra.mxu0 0.0
    %467 = vmatprep.subr.mxu0 0.0
    %468 = vmatpush1.msra.mxu0 0.0
    %469 = vmatprep.subr.mxu0 0.0
    %470 = vmatpush1.msra.mxu0 0.0
    %471 = vmatprep.subr.mxu0 0.0
    %472 = vmatpush1.msra.mxu0 0.0
    %473 = vmatprep.subr.mxu0 0.0
    %474 = vmatpush1.msra.mxu0 0.0
    %475 = vmatprep.subr.mxu0 0.0
    %476 = vmatpush1.msra.mxu0 0.0
    %477 = vmatprep.subr.mxu0 0.0
    %478 = vmatpush1.msra.mxu0 0.0
    %479 = vmatprep.subr.mxu0 0.0
    %480 = vmatpush1.msra.mxu0 0.0
    %481 = vmatprep.subr.mxu0 0.0
    %482 = vmatpush1.msra.mxu0 0.0
    %483 = vmatprep.subr.mxu0 0.0
    %484 = vmatpush1.msra.mxu0 0.0
    %485 = vmatprep.mubr.f32.mxu0 0.0
    %486 = vmatmul.mubr.f32.gmra.mrb[0].mxu0 %v209
    %v487 = vpop.f32.mrb[0].mxu0
    %v488 = vadd.f32 %v418, %v487
    %v489 = vpop.f32.mrb[0].mxu0
    %490 = vdwg.mxu0
    %v491 = vmax.f32 %v488, 0.0
    %v492 = vld [vmem:[#allocation7] sm:$0xff]
    %v493 = vld [vmem:[#allocation7 + $0x8] sm:$0xff]
    %v494 = vld [vmem:[#allocation7 + $0x10] sm:$0xff]
    %v495 = vld [vmem:[#allocation7 + $0x18] sm:$0xff]
    %v496 = vld [vmem:[#allocation7 + $0x20] sm:$0xff]
    %v497 = vld [vmem:[#allocation7 + $0x28] sm:$0xff]
    %v498 = vld [vmem:[#allocation7 + $0x30] sm:$0xff]
    %v499 = vld [vmem:[#allocation7 + $0x38] sm:$0xff]
    %v500 = vld [vmem:[#allocation7 + $0x40] sm:$0xff]
    %v501 = vld [vmem:[#allocation7 + $0x48] sm:$0xff]
    %v502 = vld [vmem:[#allocation7 + $0x50] sm:$0xff]
    %v503 = vld [vmem:[#allocation7 + $0x58] sm:$0xff]
    %v504 = vld [vmem:[#allocation7 + $0x60] sm:$0xff]
    %v505 = vld [vmem:[#allocation7 + $0x68] sm:$0xff]
    %v506 = vld [vmem:[#allocation7 + $0x70] sm:$0xff]
    %v507 = vld [vmem:[#allocation7 + $0x78] sm:$0xff]
    %v508 = vld [vmem:[%s4] sm:$0x1]
    %v510 = vlaneseq
    %v511 = vshrl.u32 %v510, 7
    %v512 = vsub.s32 0, %v511
    %v513 = vrot.slane %v508, %v512
    %515 = vmatprep.subr.mxu0 0.0
    %516 = vmatpush1.msra.mxu0 %v492
    %517 = vmatprep.subr.mxu0 0.0
    %518 = vmatpush1.msra.mxu0 %v493
    %519 = vmatprep.subr.mxu0 0.0
    %520 = vmatpush1.msra.mxu0 %v494
    %521 = vmatprep.subr.mxu0 0.0
    %522 = vmatpush1.msra.mxu0 %v495
    %523 = vmatprep.subr.mxu0 0.0
    %524 = vmatpush1.msra.mxu0 %v496
    %525 = vmatprep.subr.mxu0 0.0
    %526 = vmatpush1.msra.mxu0 %v497
    %527 = vmatprep.subr.mxu0 0.0
    %528 = vmatpush1.msra.mxu0 %v498
    %529 = vmatprep.subr.mxu0 0.0
    %530 = vmatpush1.msra.mxu0 %v499
    %531 = vmatprep.subr.mxu0 0.0
    %532 = vmatpush1.msra.mxu0 %v500
    %533 = vmatprep.subr.mxu0 0.0
    %534 = vmatpush1.msra.mxu0 %v501
    %535 = vmatprep.subr.mxu0 0.0
    %536 = vmatpush1.msra.mxu0 %v502
    %537 = vmatprep.subr.mxu0 0.0
    %538 = vmatpush1.msra.mxu0 %v503
    %539 = vmatprep.subr.mxu0 0.0
    %540 = vmatpush1.msra.mxu0 %v504
    %541 = vmatprep.subr.mxu0 0.0
    %542 = vmatpush1.msra.mxu0 %v505
    %543 = vmatprep.subr.mxu0 0.0
    %544 = vmatpush1.msra.mxu0 %v506
    %545 = vmatprep.subr.mxu0 0.0
    %546 = vmatpush1.msra.mxu0 %v507
    %547 = vmatprep.subr.mxu0 0.0
    %548 = vmatpush1.msra.mxu0 0.0
    %549 = vmatprep.subr.mxu0 0.0
    %550 = vmatpush1.msra.mxu0 0.0
    %551 = vmatprep.subr.mxu0 0.0
    %552 = vmatpush1.msra.mxu0 0.0
    %553 = vmatprep.subr.mxu0 0.0
    %554 = vmatpush1.msra.mxu0 0.0
    %555 = vmatprep.subr.mxu0 0.0
    %556 = vmatpush1.msra.mxu0 0.0
    %557 = vmatprep.subr.mxu0 0.0
    %558 = vmatpush1.msra.mxu0 0.0
    %559 = vmatprep.subr.mxu0 0.0
    %560 = vmatpush1.msra.mxu0 0.0
    %561 = vmatprep.subr.mxu0 0.0
    %562 = vmatpush1.msra.mxu0 0.0
    %563 = vmatprep.subr.mxu0 0.0
    %564 = vmatpush1.msra.mxu0 0.0
    %565 = vmatprep.subr.mxu0 0.0
    %566 = vmatpush1.msra.mxu0 0.0
    %567 = vmatprep.subr.mxu0 0.0
    %568 = vmatpush1.msra.mxu0 0.0
    %569 = vmatprep.subr.mxu0 0.0
    %570 = vmatpush1.msra.mxu0 0.0
    %571 = vmatprep.subr.mxu0 0.0
    %572 = vmatpush1.msra.mxu0 0.0
    %573 = vmatprep.subr.mxu0 0.0
    %574 = vmatpush1.msra.mxu0 0.0
    %575 = vmatprep.subr.mxu0 0.0
    %576 = vmatpush1.msra.mxu0 0.0
    %577 = vmatprep.subr.mxu0 0.0
    %578 = vmatpush1.msra.mxu0 0.0
    %579 = vmatprep.mubr.f32.mxu0 0.0
    %580 = vmatmul.mubr.f32.gmra.mrb[0].mxu0 %v491
    %v581 = vpop.f32.mrb[0].mxu0
    %v582 = vadd.f32 %v513, %v581
    %v583 = vpop.f32.mrb[0].mxu0
    %584 = vdwg.mxu0
    %585 = vst [vmem:[#allocation8] sm:$0x3] %v582
    // Predicated region
    $region34: #{tpu_custom_call.1} parent=1 // pred_check
      _
    $region35: #{tpu_custom_call.1} parent=1 // pred_check_branch
      %587 = sbr.rel (0) target = $region37
    $region36: #{tpu_custom_call.1} parent=1 // pred_region
      %s589 = ssub.s32 32, 32
      %590 = vsyncadd [#allocation4], %s589
      %s592 = sshll.u32 [#allocation8], 4
      %s593 = int_to_ptr.vmem [resolvable:$true] %s592
      %595 = dma.vmem_to_hbm [thread:$0]  %s593, 32, %s5, [#allocation4]
    $region37: #{tpu_custom_call.1} parent=1 // pred_fallthru
      _
    // Predicated region
    $region38: #{tpu_custom_call.1} parent=1 // pred_check
      _
    $region39: #{tpu_custom_call.1} parent=1 // pred_check_branch
      %597 = sbr.rel (0) target = $region41
    $region40: #{tpu_custom_call.1} parent=1 // pred_region
      %598 = dma.done [#allocation4], 32
    $region41: #{tpu_custom_call.1} parent=1 // pred_fallthru
      _
    %599 = vsyncpa [#allocation3], 1
    %600 = vsyncpa [#allocation6], 1
    %601 = vsyncpa [#allocation4], 1

</llo_original>
